<compile_context>
chip_gen: v7x
topology: tpu7x:2x2x1
jax: 0.10.0
libtpu: 0.0.40
codegen_flags: <defaults>
</compile_context>

<pallas_src>
import functools

import jax
import jax.numpy as jnp
from jax.experimental import pallas as pl
from jax.experimental.pallas import tpu as pltpu


def _dice_kernel(alpha_ref, x_ref, o_ref, *, h, inv_h, h_eps):
    # x_ref: (TB, H) VMEM tile; alpha_ref: (1, 1) SMEM scalar.
    x = x_ref[...].astype(jnp.float32)

    # Two *independent* cross-lane reductions (can overlap on the XLUs),
    # instead of mean followed by a dependent sum of squared deviations.
    s = jnp.sum(x, axis=1, keepdims=True)
    sq = jnp.sum(x * x, axis=1, keepdims=True)

    avg = s * inv_h
    # sum((x - avg)^2) + H*eps  ==  sum(x^2) - H*avg^2 + H*eps
    var = sq - h * avg * avg + h_eps

    ps = jax.nn.sigmoid((x - avg) * jax.lax.rsqrt(var))

    alpha = alpha_ref[0, 0]
    # ps*x + (1-ps)*alpha*x == x * (alpha + (1 - alpha) * ps)
    o_ref[...] = (x * (alpha + (1.0 - alpha) * ps)).astype(o_ref.dtype)


def _round_up(x, m):
    return -(-x // m) * m


def _vmem_buffer_budget_bytes():
    """Conservative byte budget for the 4 live pipeline buffers."""
    try:
        physical = pltpu.get_tpu_info().vmem_capacity_bytes
    except Exception:
        physical = 64 * 1024 * 1024  # assume the smallest (v7x) if query fails
    # Stay well inside the 32 MiB scoped limit requested below (OK on v5e/v6e/v7x).
    return min(physical // 4, 16 * 1024 * 1024)


def _pick_block_b(B, H):
    """Largest multiple-of-8 row tile that fits VMEM, keeping >= ~4 grid steps."""
    budget = _vmem_buffer_budget_bytes()
    bytes_per_row = 4 * H * 4  # (input + output) x double-buffered x f32
    max_rows_vmem = max(8, (budget // bytes_per_row) // 8 * 8)

    # Keep at least ~4 grid steps when the batch allows it so the "parallel"
    # grid axis can shard across TensorCores (v7x has 2 TCs/chip).
    rows_for_steps = _round_up(max(8, -(-B // 4)), 8)

    block_b = min(max_rows_vmem, rows_for_steps, _round_up(B, 8))
    return max(8, block_b)


def dice(x, alpha, epsilon=0.001, *, block_b=None):
    """Dice activation. x: (B, H), alpha: scalar parameter."""
    B, H = x.shape
    if block_b is None:
        block_b = _pick_block_b(B, H)
    block_b = max(8, (block_b // 8) * 8)

    alpha_smem = jnp.asarray(alpha, jnp.float32).reshape(1, 1)

    kernel = functools.partial(
        _dice_kernel,
        h=float(H),
        inv_h=1.0 / float(H),
        h_eps=float(H) * float(epsilon),
    )

    return pl.pallas_call(
        kernel,
        out_shape=jax.ShapeDtypeStruct((B, H), x.dtype),
        grid=(pl.cdiv(B, block_b),),
        in_specs=[
            pl.BlockSpec(memory_space=pltpu.MemorySpace.SMEM),  # alpha scalar
            pl.BlockSpec((block_b, H), lambda i: (i, 0)),       # x row-tile
        ],
        out_specs=pl.BlockSpec((block_b, H), lambda i: (i, 0)),
        compiler_params=pltpu.CompilerParams(
            dimension_semantics=("parallel",),
            vmem_limit_bytes=32 * 1024 * 1024,
        ),
    )(alpha_smem, x)


def dice_ref(x, alpha, epsilon=0.001):
    """Pure-JAX reference mirroring the PyTorch code exactly."""
    avg = jnp.mean(x, axis=1, keepdims=True)
    var = jnp.sum((x - avg) ** 2 + epsilon, axis=1, keepdims=True)
    ps = jax.nn.sigmoid((x - avg) / jnp.sqrt(var))
    return ps * x + (1.0 - ps) * alpha * x


if __name__ == "__main__":
    key = jax.random.PRNGKey(0)
    k_x, k_alpha, k_x2 = jax.random.split(key, 3)

    # nn.Parameter(torch.randn(1)) -> deterministic scalar init
    alpha = jax.random.normal(k_alpha, (1,), dtype=jnp.float32)[0]

    # Case 1: small, evenly-divisible batch.
    B, H = 16, 128
    x = jax.random.normal(k_x, (B, H), dtype=jnp.float32)
    out = dice(x, alpha)
    jax.block_until_ready(out)
    ref = dice_ref(x, alpha)
    assert out.shape == x.shape and out.dtype == x.dtype
    assert jnp.allclose(out, ref, atol=1e-5, rtol=1e-5), "mismatch vs reference (even batch)"

    # Case 2: ragged batch (not a multiple of the row tile) -> partial last block.
    B2 = 12
    x2 = jax.random.normal(k_x2, (B2, H), dtype=jnp.float32)
    out2 = dice(x2, alpha)
    jax.block_until_ready(out2)
    ref2 = dice_ref(x2, alpha)
    assert jnp.allclose(out2, ref2, atol=1e-5, rtol=1e-5), "mismatch vs reference (ragged batch)"

    print("KERNEL_OK")
</pallas_src>

<mosaic_0001>
module attributes {stable_mosaic.version = 11 : i64} {
  func.func @_dice_kernel(%arg0: i32, %arg1: memref<1x1xf32, #tpu.memory_space<smem>>, %arg2: memref<8x128xf32, #tpu.memory_space<vmem>>, %arg3: memref<8x128xf32, #tpu.memory_space<vmem>>) attributes {dimension_semantics = [#tpu.dimension_semantics<parallel>], iteration_bounds = array<i64: 2>, scalar_prefetch = 0 : i64, scratch_operands = 0 : i64, tpu.core_type = #tpu.core_type<tc>, window_params = [{transform_indices = @transform_0, window_bounds = array<i64: 1, 1>}, {transform_indices = @transform_1, window_bounds = array<i64: 8, 128>}, {transform_indices = @transform_2, window_bounds = array<i64: 8, 128>}]} {
    %c0 = arith.constant 0 : index
    %c0_0 = arith.constant 0 : index
    %0 = vector.load %arg2[%c0, %c0_0] : memref<8x128xf32, #tpu.memory_space<vmem>>, vector<8x128xf32>
    %cst = arith.constant dense<0.000000e+00> : vector<8xf32>
    %1 = vector.multi_reduction <add>, %0, %cst [1] : vector<8x128xf32> to vector<8xf32>
    %2 = vector.shape_cast %1 : vector<8xf32> to vector<8x1xf32>
    %3 = arith.mulf %0, %0 : vector<8x128xf32>
    %cst_1 = arith.constant dense<0.000000e+00> : vector<8xf32>
    %4 = vector.multi_reduction <add>, %3, %cst_1 [1] : vector<8x128xf32> to vector<8xf32>
    %5 = vector.shape_cast %4 : vector<8xf32> to vector<8x1xf32>
    %cst_2 = arith.constant 7.812500e-03 : f32
    %6 = vector.broadcast %cst_2 : f32 to vector<8x1xf32>
    %7 = arith.mulf %2, %6 : vector<8x1xf32>
    %cst_3 = arith.constant 1.280000e+02 : f32
    %8 = vector.broadcast %cst_3 : f32 to vector<8x1xf32>
    %9 = arith.mulf %8, %7 : vector<8x1xf32>
    %10 = arith.mulf %9, %7 : vector<8x1xf32>
    %11 = arith.subf %5, %10 : vector<8x1xf32>
    %cst_4 = arith.constant 1.280000e-01 : f32
    %12 = vector.broadcast %cst_4 : f32 to vector<8x1xf32>
    %13 = arith.addf %11, %12 : vector<8x1xf32>
    %14 = vector.broadcast %7 : vector<8x1xf32> to vector<8x128xf32>
    %15 = arith.subf %0, %14 : vector<8x128xf32>
    %16 = math.rsqrt %13 : vector<8x1xf32>
    %17 = vector.broadcast %16 : vector<8x1xf32> to vector<8x128xf32>
    %18 = arith.mulf %15, %17 : vector<8x128xf32>
    %19 = arith.negf %18 : vector<8x128xf32>
    %20 = math.exp %19 : vector<8x128xf32>
    %cst_5 = arith.constant 1.000000e+00 : f32
    %21 = vector.broadcast %cst_5 : f32 to vector<8x128xf32>
    %22 = arith.addf %21, %20 : vector<8x128xf32>
    %23 = arith.divf %21, %22 : vector<8x128xf32>
    %c0_6 = arith.constant 0 : index
    %c0_7 = arith.constant 0 : index
    %24 = memref.load %arg1[%c0_6, %c0_7] : memref<1x1xf32, #tpu.memory_space<smem>>
    %cst_8 = arith.constant 1.000000e+00 : f32
    %25 = arith.subf %cst_8, %24 : f32
    %26 = vector.broadcast %25 : f32 to vector<8x128xf32>
    %27 = arith.mulf %26, %23 : vector<8x128xf32>
    %28 = vector.broadcast %24 : f32 to vector<8x128xf32>
    %29 = arith.addf %28, %27 : vector<8x128xf32>
    %30 = arith.mulf %0, %29 : vector<8x128xf32>
    %c0_9 = arith.constant 0 : index
    %c0_10 = arith.constant 0 : index
    %31 = vector.load %arg3[%c0_9, %c0_10] : memref<8x128xf32, #tpu.memory_space<vmem>>, vector<8x128xf32>
    tpu.vector_store %arg3[%c0_9, %c0_10], %30 {strides = array<i32>} : memref<8x128xf32, #tpu.memory_space<vmem>>, vector<8x128xf32>,
    return
  }
  func.func @transform_0(%arg0: i32) -> (i32, i32) {
    %c0_i32 = arith.constant 0 : i32
    %c0_i32_0 = arith.constant 0 : i32
    %c0_i32_1 = arith.constant 0 : i32
    return %c0_i32, %c0_i32_0 : i32, i32
  }
  func.func @transform_1(%arg0: i32) -> (i32, i32) {
    %c0_i32 = arith.constant 0 : i32
    %c0_i32_0 = arith.constant 0 : i32
    return %arg0, %c0_i32 : i32, i32
  }
  func.func @transform_2(%arg0: i32) -> (i32, i32) {
    %c0_i32 = arith.constant 0 : i32
    %c0_i32_0 = arith.constant 0 : i32
    return %arg0, %c0_i32 : i32, i32
  }
}

</mosaic_0001>

<llo_original>
// kernel: tpu_custom_call.1
$region0: #{tpu_custom_call.1}
  #allocation0 [shape = 'u32[]', space=smem, size = 0x4, offset = 0x4, fixed_abs, tag = 'smem constant byte address 0x4 - core index']
  #allocation1 [shape = 'u32[144,128]{1,0:T(1,128)}', space=vmem, size = 0x12000, scoped, tag = 'internal scratch']
  #allocation2 [shape = 'f32[1,1]{1,0:T(1,128)S(6)}', space=smem, size = 0x200, scoped, tag = 'scoped memory for tpu_custom_call.1']
  %s0 = inlined_call_operand.<no memory space> [shape: f32[1,1], index: 0, kind: input, shape index: {}]
  %s1 = inlined_call_operand.hbm [shape: f32[16,128], index: 1, kind: input, shape index: {}]
  %s2 = inlined_call_operand.hbm [shape: f32[16,128], index: 2, kind: output, shape index: {}]
  %s3 = sld [smem:[#allocation0]]
  $region45: #{tpu_custom_call.1} parent=0
    _
  %s5 = ssub.s32 1, %s3
  %s6 = scalar_select 0, %s5, %s3
  %7 = sst [smem:[#allocation2]] %s0
  $region1: #{tpu_custom_call.1} parent=0
    #allocation3 [shape = 'u8[8192]{0}', space=vmem, size = 0x2000, scoped, tag = 'input window, operand 1']
    #allocation4 [shape = 's32[2]{0}', space=sflag, size = 0x8, scoped, tag = 'scoped memory for tpu_custom_call.1']
    #allocation5 [shape = 's32[2]{0}', space=sflag, size = 0x8, scoped, tag = 'scoped memory for tpu_custom_call.1']
    #allocation6 [shape = 'u8[8192]{0}', space=vmem, size = 0x2000, scoped, tag = 'output window, operand 0']
    %8 = vsyncpa [#allocation4], 0
    %s9 = scalar_lea.sflag [#allocation4], 1
    %10 = vsyncpa %s9, 0
    %11 = vsyncpa [#allocation5], 0
    %s12 = scalar_lea.sflag [#allocation5], 1
    %13 = vsyncpa %s12, 0
    loop: start=0, step=1, limit=4
    $region2: #{tpu_custom_call.1} parent=1 // loop_pre_header
      _
    $region3: #{tpu_custom_call.1} parent=1 // loop_header
      %s15 = sphi 0, %s19
      %p16 = scmp.ge.s32.totalorder %s15, 4
      %s23 = sphi 0, %s23
      %s25 = sphi 0, %s23
      %s26 = sphi 0, %s25
      %s40 = sphi 0, %s26
      %s46 = sphi 0, %s48
      %s49 = sphi 0, %s46
      %s50 = sphi 0, %s49
      %s66 = sphi 0, %s50
      %s72 = sphi 0, %s74
      %s75 = sphi 0, %s72
      %s76 = sphi 0, %s75
      %s92 = sphi 0, %s76
    $region4: #{tpu_custom_call.1} parent=1 // loop_header_branch
      %18 = sbr.rel (%p16) target = $region8
    $region5: #{tpu_custom_call.1} parent=1 // loop_body
      %s20 = ssub.s32 %s15, 1
      %s21 = ssub.s32 %s15, 2
      %s22 = sadd.s32 %s15, 1
      %s24 = sadd.s32 %s23, 1
      %p27 = scmp.eq.s32.totalorder %s15, 1
      %p28 = scmp.ne.s32.totalorder %s23, %s25
      %p29 = scmp.eq.s32.totalorder %s15, 0
      %p30 = por %p28, %p29
      %p31 = scmp.ne.s32.totalorder %s23, %s25
      %p32 = scmp.eq.s32.totalorder %s20, 1
      %p33 = por %p31, %p32
      %p34 = scmp.ne.s32.totalorder %s25, %s26
      %p35 = scmp.eq.s32.totalorder %s20, 0
      %p36 = por %p34, %p35
      %p37 = scmp.ne.s32.totalorder %s25, %s26
      %p38 = scmp.eq.s32.totalorder %s21, 1
      %p39 = por %p37, %p38
      %p41 = scmp.ne.s32.totalorder %s26, %s40
      %p42 = scmp.eq.s32.totalorder %s21, 0
      %p43 = por %p41, %p42
      %s44 = ssub.s32 %s15, %s22
      %p45 = scmp.eq.s32.totalorder %s44, 0
      %s47 = sadd.s32 %s46, 1
      %s48 = scalar_select %p45, %s46, %s47
      %p51 = pneg %p45
      %p52 = scmp.eq.s32.totalorder %s15, 1
      %p53 = por %p51, %p52
      %p54 = scmp.ne.s32.totalorder %s46, %s49
      %p55 = scmp.eq.s32.totalorder %s15, 0
      %p56 = por %p54, %p55
      %p57 = scmp.ne.s32.totalorder %s46, %s49
      %p58 = scmp.eq.s32.totalorder %s20, 1
      %p59 = por %p57, %p58
      %p60 = scmp.ne.s32.totalorder %s49, %s50
      %p61 = scmp.eq.s32.totalorder %s20, 0
      %p62 = por %p60, %p61
      %p63 = scmp.ne.s32.totalorder %s49, %s50
      %p64 = scmp.eq.s32.totalorder %s21, 1
      %p65 = por %p63, %p64
      %p67 = scmp.ne.s32.totalorder %s50, %s66
      %p68 = scmp.eq.s32.totalorder %s21, 0
      %p69 = por %p67, %p68
      %s70 = ssub.s32 %s15, %s22
      %p71 = scmp.eq.s32.totalorder %s70, 0
      %s73 = sadd.s32 %s72, 1
      %s74 = scalar_select %p71, %s72, %s73
      %p77 = pneg %p71
      %p78 = scmp.eq.s32.totalorder %s15, 1
      %p79 = por %p77, %p78
      %p80 = scmp.ne.s32.totalorder %s72, %s75
      %p81 = scmp.eq.s32.totalorder %s15, 0
      %p82 = por %p80, %p81
      %p83 = scmp.ne.s32.totalorder %s72, %s75
      %p84 = scmp.eq.s32.totalorder %s20, 1
      %p85 = por %p83, %p84
      %p86 = scmp.ne.s32.totalorder %s75, %s76
      %p87 = scmp.eq.s32.totalorder %s20, 0
      %p88 = por %p86, %p87
      %p89 = scmp.ne.s32.totalorder %s75, %s76
      %p90 = scmp.eq.s32.totalorder %s21, 1
      %p91 = por %p89, %p90
      %p93 = scmp.ne.s32.totalorder %s76, %s92
      %p94 = scmp.eq.s32.totalorder %s21, 0
      %p95 = por %p93, %p94
      %p96 = scmp.le.s32.totalorder 1, %s15
      %p97 = scmp.lt.s32.totalorder %s15, 3
      %p98 = pnand %p96, %p97
      %p99 = pneg %p98
      // Predicated region
      $region9: #{tpu_custom_call.1} parent=5 // pred_check
        _
      $region10: #{tpu_custom_call.1} parent=5 // pred_check_branch
        %101 = sbr.rel (%p98) target = $region12
      $region11: #{tpu_custom_call.1} parent=5 // pred_region
        %s102 = ssub.s32 %s15, 1
        // Predicated region
        $region13: #{tpu_custom_call.1} parent=11 // pred_check
          %p103 = pneg %p36
        $region14: #{tpu_custom_call.1} parent=11 // pred_check_branch
          %105 = sbr.rel (%p103) target = $region16
        $region15: #{tpu_custom_call.1} parent=11 // pred_region
          _
        $region16: #{tpu_custom_call.1} parent=11 // pred_fallthru
          _
      $region12: #{tpu_custom_call.1} parent=5 // pred_fallthru
        _
      %p106 = scmp.lt.s32.totalorder %s15, 2
      // Predicated region
      $region17: #{tpu_custom_call.1} parent=5 // pred_check
        %p107 = pneg %p106
      $region18: #{tpu_custom_call.1} parent=5 // pred_check_branch
        %109 = sbr.rel (%p107) target = $region20
      $region19: #{tpu_custom_call.1} parent=5 // pred_region
        // Predicated region
        $region21: #{tpu_custom_call.1} parent=19 // pred_check
          %p110 = pneg %p56
        $region22: #{tpu_custom_call.1} parent=19 // pred_check_branch
          %112 = sbr.rel (%p110) target = $region24
        $region23: #{tpu_custom_call.1} parent=19 // pred_region
          %s113 = sand.u32 %s46, 1
          %s114 = scalar_lea.sflag [#allocation4], %s113
          %s115 = sand.u32 %s46, 1
          %s116 = smul.addr %s115, 8
          %s117 = scalar_lea.vmem [#allocation3], %s116
          %s119 = ssub.s32 128, 128
          %120 = vsyncadd %s114, %s119
          %s121 = smul.addr %s15, 128
          %s122 = scalar_lea.hbm %s1, %s121
          %s124 = sshll.u32 %s117, 4
          %s125 = int_to_ptr.vmem [resolvable:$true] %s124
          %127 = dma.hbm_to_vmem [thread:$0]  %s122, 128, %s125, %s114
        $region24: #{tpu_custom_call.1} parent=19 // pred_fallthru
          _
      $region20: #{tpu_custom_call.1} parent=5 // pred_fallthru
        _
      %p128 = scmp.le.s32.totalorder 1, %s15
      %p129 = scmp.lt.s32.totalorder %s15, 3
      %p130 = pnand %p128, %p129
      %p131 = pneg %p130
      // Predicated region
      $region25: #{tpu_custom_call.1} parent=5 // pred_check
        _
      $region26: #{tpu_custom_call.1} parent=5 // pred_check_branch
        %133 = sbr.rel (%p130) target = $region28
      $region27: #{tpu_custom_call.1} parent=5 // pred_region
        %s134 = ssub.s32 %s15, 1
        %s135 = sand.u32 %s49, 1
        %s136 = scalar_lea.sflag [#allocation4], %s135
        %s137 = sand.u32 %s49, 1
        %s138 = smul.addr %s137, 8
        %s139 = scalar_lea.vmem [#allocation3], %s138
        // Predicated region
        $region29: #{tpu_custom_call.1} parent=27 // pred_check
          %p140 = pneg %p62
        $region30: #{tpu_custom_call.1} parent=27 // pred_check_branch
          %142 = sbr.rel (%p140) target = $region32
        $region31: #{tpu_custom_call.1} parent=27 // pred_region
          %143 = dma.done %s136, 128
        $region32: #{tpu_custom_call.1} parent=27 // pred_fallthru
          _
        %p144 = pneg %p36
        %p145 = pneg %p33
        %s146 = sand.u32 %s49, 1
        %s147 = scalar_lea.sflag [#allocation4], %s146
        %s148 = sand.u32 %s49, 1
        %s149 = smul.addr %s148, 8
        %s150 = scalar_lea.vmem [#allocation3], %s149
        %p151 = pneg %p62
        %p152 = pneg %p59
        %p153 = pneg %p88
        %p154 = pneg %p85
        %s155 = sand.u32 %s75, 1
        %s156 = scalar_lea.sflag [#allocation5], %s155
        %s157 = sand.u32 %s75, 1
        %s158 = smul.addr %s157, 8
        %s159 = scalar_lea.vmem [#allocation6], %s158
        %v160 = vld [vmem:[%s139] sm:$0xff]
        %161 = vadd.xlane.f32.xlu0 %v160
        %v162 = vpop.xlane.xlu0 %161
        %v163 = vmul.f32 %v160, %v160
        %164 = vadd.xlane.f32.xlu0 %v163
        %v165 = vpop.xlane.xlu0 %164
        %v166 = vmul.f32 %v162, 0.0078125
        %v167 = vmul.f32 %v166, 128.0
        %v168 = vmul.f32 %v167, %v166
        %v169 = vsub.f32 %v165, %v168
        %v170 = vadd.f32 %v169, 0.128
        %v171 = vsub.f32 %v160, %v166
        %v172 = vrsqrt.pop %v170
        %v173 = vmul.f32 %v171, %v172
        %v174 = vxor.u32 %v173, 2147483648
        %v175 = vmul.f32 %v174, 1.442695
        %v176 = vpow.pop %v175
        %v177 = vadd.f32 %v176, 1.0
        %v178 = vrcp.pop %v177
        %v179 = vmul.f32 1.0, %v178
        %s180 = sld [smem:[#allocation2]]
        %s181 = ssub.f32 1.0, %s180
        %v182 = vstv %s181
        %v183 = vmul.f32 %v182, %v179
        %v184 = vstv %s180
        %v185 = vadd.f32 %v184, %v183
        %v186 = vmul.f32 %v160, %v185
        %187 = vst [vmem:[%s159] sm:$0xff] %v186
        %s188 = sand.u32 %s75, 1
        %s189 = scalar_lea.sflag [#allocation5], %s188
        %s190 = sand.u32 %s75, 1
        %s191 = smul.addr %s190, 8
        %s192 = scalar_lea.vmem [#allocation6], %s191
        // Predicated region
        $region33: #{tpu_custom_call.1} parent=27 // pred_check
          %p193 = pneg %p85
        $region34: #{tpu_custom_call.1} parent=27 // pred_check_branch
          %195 = sbr.rel (%p193) target = $region36
        $region35: #{tpu_custom_call.1} parent=27 // pred_region
          %s197 = ssub.s32 128, 128
          %198 = vsyncadd %s189, %s197
          %s199 = smul.addr %s20, 128
          %s200 = scalar_lea.hbm %s2, %s199
          %s202 = sshll.u32 %s192, 4
          %s203 = int_to_ptr.vmem [resolvable:$true] %s202
          %205 = dma.vmem_to_hbm [thread:$0]  %s203, 128, %s200, %s189
        $region36: #{tpu_custom_call.1} parent=27 // pred_fallthru
          _
      $region28: #{tpu_custom_call.1} parent=5 // pred_fallthru
        _
      %p206 = scmp.le.s32.totalorder 2, %s15
      // Predicated region
      $region37: #{tpu_custom_call.1} parent=5 // pred_check
        %p207 = pneg %p206
      $region38: #{tpu_custom_call.1} parent=5 // pred_check_branch
        %209 = sbr.rel (%p207) target = $region40
      $region39: #{tpu_custom_call.1} parent=5 // pred_region
        %s210 = ssub.s32 %s15, 2
        // Predicated region
        $region41: #{tpu_custom_call.1} parent=39 // pred_check
          %p211 = pneg %p91
        $region42: #{tpu_custom_call.1} parent=39 // pred_check_branch
          %213 = sbr.rel (%p211) target = $region44
        $region43: #{tpu_custom_call.1} parent=39 // pred_region
          %s214 = sand.u32 %s76, 1
          %s215 = scalar_lea.sflag [#allocation5], %s214
          %s216 = sand.u32 %s76, 1
          %s217 = smul.addr %s216, 8
          %s218 = scalar_lea.vmem [#allocation6], %s217
          %219 = dma.done %s215, 128
        $region44: #{tpu_custom_call.1} parent=39 // pred_fallthru
          _
      $region40: #{tpu_custom_call.1} parent=5 // pred_fallthru
        _
    $region6: #{tpu_custom_call.1} parent=1 // loop_footer
      %s19 = sadd.s32 1, %s15
    $region7: #{tpu_custom_call.1} parent=1 // loop_footer_branch
      %14 = sbr.rel target = $region3
    $region8: #{tpu_custom_call.1} parent=1 // loop_exit
      _
    %220 = vsyncpa [#allocation4], 1
    %s221 = scalar_lea.sflag [#allocation4], 1
    %222 = vsyncpa %s221, 1
    %223 = vsyncpa [#allocation5], 1
    %s224 = scalar_lea.sflag [#allocation5], 1
    %225 = vsyncpa %s224, 1

</llo_original>
